<compile_context>
chip_gen: v6e
topology: v6e:2x2x1
jax: 0.10.0
libtpu: 0.0.40
codegen_flags: <defaults>
</compile_context>

<pallas_src>
import jax
import jax.numpy as jnp
from jax.experimental import pallas as pl
from jax.experimental.pallas import tpu as pltpu


def _cdiv(a, b):
    return -(-a // b)


def _round_up(x, m):
    return ((x + m - 1) // m) * m


def _num_tensorcores_per_chip():
    """2 TensorCores on v7x (and v4/v5p megacore), 1 on v5e/v6e. Fail-safe: 1."""
    try:
        dev = jax.devices()[0]
        if dev.platform != "tpu":
            return 1
        kind = str(getattr(dev, "device_kind", "")).lower()
        if "v7" in kind or "tpu7" in kind:
            return 2
        if ("v4" in kind or "v5p" in kind) and "lite" not in kind and "v5e" not in kind:
            return 2
        return 1
    except Exception:
        return 1


def _patch_proj_kernel(x_ref, w_ref, b_ref, o_ref):
    # x_ref: (tm, K) bf16, w_ref: (K, E) bf16, b_ref: (1, E) f32, o_ref: (tm, E).
    # MXU matmul with f32 accumulation, f32 epilogue (no bf16 VPU needed).
    acc = jnp.dot(x_ref[...], w_ref[...], preferred_element_type=jnp.float32)
    o_ref[...] = (acc + b_ref[...]).astype(o_ref.dtype)


def _choose_tm(M, K, E, in_bytes, out_bytes, num_cores,
               vmem_budget_bytes=12 * 1024 * 1024):
    """Pick the M tile.

    Biggest tile the VMEM budget allows (double-buffered input + output rows,
    lane-padded), capped at 8192 rows, multiple of 16.  On single-TC chips
    (v5e/v6e) that's final: extra grid steps only add ~0.35 us each.  On
    multi-TC chips (v7x) ensure >= num_cores steps when M allows, and only
    split further while tiles stay >= 2048 rows.
    """
    g = 16
    K_pad = _round_up(K, 128)
    E_pad = _round_up(E, 128)
    per_row = 2 * (K_pad * in_bytes + E_pad * out_bytes)   # 2x double-buffered in + out
    tm = vmem_budget_bytes // max(per_row, 1)
    tm = max(g, min(8192, tm))
    tm = (tm // g) * g
    tm = min(tm, _round_up(M, g))                          # no point exceeding (padded) M

    if num_cores > 1:
        # At least one step per TensorCore (when M has enough rows).
        while tm > g and _cdiv(M, tm) < num_cores and M > (num_cores - 1) * g:
            tm = max(g, ((tm // 2) // g) * g)
        # Prefer 2*num_cores steps only while tiles stay large (>= 2048 rows).
        min_rows = 2048
        while _cdiv(M, tm) < 2 * num_cores and (tm // 2) >= min_rows:
            tm = ((tm // 2) // g) * g
    return tm


def _vmem_limit_bytes(tm, K, E, in_bytes, out_bytes):
    """Explicit scoped-VMEM limit: padded double-buffered tiles + resident
    weights/bias + 2 MiB pipeline margin."""
    K_pad = _round_up(K, 128)
    E_pad = _round_up(E, 128)
    tiles = 2 * tm * (K_pad * in_bytes + E_pad * out_bytes)
    resident = 2 * (_round_up(K, 16) * E_pad * in_bytes + 8 * E_pad * 4)
    return int(tiles + resident + (2 << 20))


def patch_embed_3d(x, weight, bias, patch_size,
                   compute_dtype=jnp.bfloat16, out_dtype=None):
    """x: (B, C, D, H, W) f32; weight: (E, C, pd, ph, pw); bias: (E,)."""
    B, C, D, H, W = x.shape
    pd, ph, pw = patch_size
    E = weight.shape[0]
    assert D % pd == 0 and H % ph == 0 and W % pw == 0, \
        "spatial dims must be divisible by patch_size (PyTorch module does no padding)"
    Dp, Hp, Wp = D // pd, H // ph, W // pw
    M = B * Dp * Hp * Wp
    K = C * pd * ph * pw
    out_dtype = x.dtype if out_dtype is None else out_dtype

    # --- patch extraction (reshape/transpose/cast). With allow_input_fusion
    # this producer can fuse into the pallas_call's input feed; if it
    # materializes instead, that traffic is counted in the cost estimate.
    xp = x.reshape(B, C, Dp, pd, Hp, ph, Wp, pw)
    xp = xp.transpose(0, 2, 4, 6, 1, 3, 5, 7)           # (B, Dp, Hp, Wp, C, pd, ph, pw)
    patches = xp.reshape(M, K).astype(compute_dtype)    # (M, K), (c,kd,kh,kw) order

    w_mat = weight.reshape(E, K).T.astype(compute_dtype)   # (K, E), same flatten order
    b_row = bias.reshape(1, E).astype(jnp.float32)

    in_bytes = jnp.dtype(compute_dtype).itemsize
    out_bytes = jnp.dtype(out_dtype).itemsize
    num_cores = _num_tensorcores_per_chip()
    tm = _choose_tm(M, K, E, in_bytes, out_bytes, num_cores)
    grid = (_cdiv(M, tm),)                               # uneven last block handled by Pallas

    x_bytes = M * K * jnp.dtype(x.dtype).itemsize        # f32 read of x for extraction
    cost = pl.CostEstimate(
        flops=2 * M * K * E,
        transcendentals=0,
        bytes_accessed=(x_bytes                          # read original x
                        + 2 * M * K * in_bytes           # (possible) patch matrix write+read
                        + K * E * in_bytes + E * 4       # weights + bias
                        + M * E * out_bytes),            # output
    )

    out = pl.pallas_call(
        _patch_proj_kernel,
        out_shape=jax.ShapeDtypeStruct((M, E), out_dtype),
        grid_spec=pltpu.PrefetchScalarGridSpec(
            num_scalar_prefetch=0,
            grid=grid,
            in_specs=[
                pl.BlockSpec((tm, K), lambda i: (i, 0)),   # patch rows, tiled over M
                pl.BlockSpec((K, E), lambda i: (0, 0)),    # weights, resident
                pl.BlockSpec((1, E), lambda i: (0, 0)),    # bias, resident
            ],
            out_specs=pl.BlockSpec((tm, E), lambda i: (i, 0)),
        ),
        compiler_params=pltpu.CompilerParams(
            dimension_semantics=("parallel",),
            allow_input_fusion=[True, False, False],
            vmem_limit_bytes=_vmem_limit_bytes(tm, K, E, in_bytes, out_bytes),
        ),
        cost_estimate=cost,
    )(patches, w_mat, b_row)

    return out.reshape(B, Dp, Hp, Wp, E)


def _reference(x, weight, bias, patch_size, compute_dtype=jnp.bfloat16):
    # Pure-JAX reference with the same bf16-input / f32-accumulate numerics.
    y = jax.lax.conv_general_dilated(
        x.astype(compute_dtype), weight.astype(compute_dtype),
        window_strides=patch_size,
        padding="VALID",
        dimension_numbers=("NCDHW", "OIDHW", "NCDHW"),
        preferred_element_type=jnp.float32,
    )
    y = y + bias.reshape(1, -1, 1, 1, 1).astype(jnp.float32)
    y = y.astype(x.dtype)
    return jnp.transpose(y, (0, 2, 3, 4, 1))  # b c d h w -> b d h w c


if __name__ == "__main__":
    # Small, deterministic configuration matching SwinUNet's PatchEmbed3D
    # (in_chans=1, embed_dim=96, patch 4x4x4).
    patch_size = (4, 4, 4)
    in_chans = 1
    embed_dim = 96
    B, D, H, W = 2, 32, 32, 32   # M = 2*8*8*8 = 1024 patch rows

    key = jax.random.PRNGKey(0)
    kx, kw, kb = jax.random.split(key, 3)
    x = jax.random.normal(kx, (B, in_chans, D, H, W), dtype=jnp.float32)
    # Conv3d weight shape: (embed_dim, in_chans, pd, ph, pw)
    weight = 0.02 * jax.random.normal(
        kw, (embed_dim, in_chans) + patch_size, dtype=jnp.float32)
    bias = 0.01 * jax.random.normal(kb, (embed_dim,), dtype=jnp.float32)

    fn = jax.jit(lambda a, w, b: patch_embed_3d(a, w, b, patch_size))
    out = jax.block_until_ready(fn(x, weight, bias))

    ref = jax.block_until_ready(_reference(x, weight, bias, patch_size))
    assert out.shape == (B, D // 4, H // 4, W // 4, embed_dim), out.shape
    max_err = float(jnp.max(jnp.abs(out - ref)))
    assert jnp.allclose(out, ref, atol=2e-3, rtol=2e-3), \
        f"mismatch vs reference conv (max abs err {max_err})"

    print("KERNEL_OK")
</pallas_src>

<mosaic_0001>
module attributes {stable_mosaic.version = 11 : i64} {
  func.func @_patch_proj_kernel(%arg0: i32, %arg1: memref<1024x64xbf16, #tpu.memory_space<vmem>>, %arg2: memref<64x96xbf16, #tpu.memory_space<vmem>>, %arg3: memref<1x96xf32, #tpu.memory_space<vmem>>, %arg4: memref<1024x96xf32, #tpu.memory_space<vmem>>) attributes {dimension_semantics = [#tpu.dimension_semantics<parallel>], iteration_bounds = array<i64: 1>, scalar_prefetch = 0 : i64, scratch_operands = 0 : i64, tpu.core_type = #tpu.core_type<tc>, window_params = [{transform_indices = @transform_0, window_bounds = array<i64: 1024, 64>}, {pipeline_mode = #tpu.pipeline_mode<synchronous>, transform_indices = @transform_1, window_bounds = array<i64: 64, 96>}, {pipeline_mode = #tpu.pipeline_mode<synchronous>, transform_indices = @transform_2, window_bounds = array<i64: 1, 96>}, {transform_indices = @transform_3, window_bounds = array<i64: 1024, 96>}]} {
    %c0 = arith.constant 0 : index
    %c0_0 = arith.constant 0 : index
    %0 = vector.load %arg1[%c0, %c0_0] : memref<1024x64xbf16, #tpu.memory_space<vmem>>, vector<1024x64xbf16>
    %c0_1 = arith.constant 0 : index
    %c0_2 = arith.constant 0 : index
    %1 = vector.load %arg2[%c0_1, %c0_2] : memref<64x96xbf16, #tpu.memory_space<vmem>>, vector<64x96xbf16>
    %cst = arith.constant dense<0.000000e+00> : vector<1024x96xf32>
    %2 = tpu.matmul %0, %1, %cst {dimension_numbers = #tpu.dot_dimension_numbers<[1], [0], [0], [1], [0, 0, 1, 1], [], []>} : vector<1024x64xbf16>, vector<64x96xbf16>, vector<1024x96xf32> -> vector<1024x96xf32>
    %c0_3 = arith.constant 0 : index
    %c0_4 = arith.constant 0 : index
    %3 = vector.load %arg3[%c0_3, %c0_4] : memref<1x96xf32, #tpu.memory_space<vmem>>, vector<1x96xf32>
    %4 = vector.broadcast %3 : vector<1x96xf32> to vector<1024x96xf32>
    %5 = arith.addf %2, %4 : vector<1024x96xf32>
    %c0_5 = arith.constant 0 : index
    %c0_6 = arith.constant 0 : index
    %6 = vector.load %arg4[%c0_5, %c0_6] : memref<1024x96xf32, #tpu.memory_space<vmem>>, vector<1024x96xf32>
    tpu.vector_store %arg4[%c0_5, %c0_6], %5 {strides = array<i32>} : memref<1024x96xf32, #tpu.memory_space<vmem>>, vector<1024x96xf32>,
    return
  }
  func.func @transform_0(%arg0: i32) -> (i32, i32) {
    %c0_i32 = arith.constant 0 : i32
    %c0_i32_0 = arith.constant 0 : i32
    return %arg0, %c0_i32 : i32, i32
  }
  func.func @transform_1(%arg0: i32) -> (i32, i32) {
    %c0_i32 = arith.constant 0 : i32
    %c0_i32_0 = arith.constant 0 : i32
    %c0_i32_1 = arith.constant 0 : i32
    return %c0_i32, %c0_i32_0 : i32, i32
  }
  func.func @transform_2(%arg0: i32) -> (i32, i32) {
    %c0_i32 = arith.constant 0 : i32
    %c0_i32_0 = arith.constant 0 : i32
    %c0_i32_1 = arith.constant 0 : i32
    return %c0_i32, %c0_i32_0 : i32, i32
  }
  func.func @transform_3(%arg0: i32) -> (i32, i32) {
    %c0_i32 = arith.constant 0 : i32
    %c0_i32_0 = arith.constant 0 : i32
    return %arg0, %c0_i32 : i32, i32
  }
}

</mosaic_0001>

<llo_original>
// kernel: _lambda_.1
$region0: #{_lambda_.1}
  #allocation0 [shape = 'u32[]', space=smem, size = 0x4, offset = 0x4, fixed_abs, tag = 'smem constant byte address 0x4 - core index']
  #allocation1 [shape = 'u32[144,128]{1,0:T(1,128)}', space=vmem, size = 0x12000, scoped, tag = 'internal scratch']
  %s0 = inlined_call_operand.vmem [shape: bf16[1024,64], index: 0, kind: input, shape index: {}]
  %s1 = inlined_call_operand.vmem [shape: bf16[64,96], index: 1, kind: input, shape index: {}]
  %s2 = inlined_call_operand.vmem [shape: f32[1,96], index: 2, kind: input, shape index: {}]
  %s3 = inlined_call_operand.hbm [shape: f32[1024,96], index: 3, kind: output, shape index: {}]
  %s4 = sld [smem:[#allocation0]]
  $region22: #{_lambda_.1} parent=0
    _
  %s6 = ssub.s32 1, %s4
  %s7 = scalar_select 0, %s6, %s4
  $region1: #{_lambda_.1} parent=0
    #allocation2 [shape = 'u8[524288]{0}', space=vmem, size = 0x80000, scoped, tag = 'output window, operand 0, single buffered']
    #allocation3 [shape = 's32[1]{0}', space=sflag, size = 0x4, scoped, tag = 'scoped memory for _lambda_.1']
    %8 = vsyncpa [#allocation3], 0
    // Predicated region
    $region2: #{_lambda_.1} parent=1 // pred_check
      _
    $region3: #{_lambda_.1} parent=1 // pred_check_branch
      %10 = sbr.rel (0) target = $region5
    $region4: #{_lambda_.1} parent=1 // pred_region
      _
    $region5: #{_lambda_.1} parent=1 // pred_fallthru
      _
    // Predicated region
    $region6: #{_lambda_.1} parent=1 // pred_check
      _
    $region7: #{_lambda_.1} parent=1 // pred_check_branch
      %12 = sbr.rel (0) target = $region9
    $region8: #{_lambda_.1} parent=1 // pred_region
      _
    $region9: #{_lambda_.1} parent=1 // pred_fallthru
      _
    // Predicated region
    $region10: #{_lambda_.1} parent=1 // pred_check
      _
    $region11: #{_lambda_.1} parent=1 // pred_check_branch
      %14 = sbr.rel (0) target = $region13
    $region12: #{_lambda_.1} parent=1 // pred_region
      _
    $region13: #{_lambda_.1} parent=1 // pred_fallthru
      _
    %v16 = vld [vmem:[%s0] sm:$0xf]
    %v17 = vld [vmem:[%s0 + $0x4] sm:$0xf]
    %v18 = vld [vmem:[%s0 + $0x8] sm:$0xf]
    %v19 = vld [vmem:[%s0 + $0xc] sm:$0xf]
    %v20 = vld [vmem:[%s0 + $0x10] sm:$0xf]
    %v21 = vld [vmem:[%s0 + $0x14] sm:$0xf]
    %v22 = vld [vmem:[%s0 + $0x18] sm:$0xf]
    %v23 = vld [vmem:[%s0 + $0x1c] sm:$0xf]
    %v24 = vld [vmem:[%s0 + $0x20] sm:$0xf]
    %v25 = vld [vmem:[%s0 + $0x24] sm:$0xf]
    %v26 = vld [vmem:[%s0 + $0x28] sm:$0xf]
    %v27 = vld [vmem:[%s0 + $0x2c] sm:$0xf]
    %v28 = vld [vmem:[%s0 + $0x30] sm:$0xf]
    %v29 = vld [vmem:[%s0 + $0x34] sm:$0xf]
    %v30 = vld [vmem:[%s0 + $0x38] sm:$0xf]
    %v31 = vld [vmem:[%s0 + $0x3c] sm:$0xf]
    %v32 = vld [vmem:[%s0 + $0x40] sm:$0xf]
    %v33 = vld [vmem:[%s0 + $0x44] sm:$0xf]
    %v34 = vld [vmem:[%s0 + $0x48] sm:$0xf]
    %v35 = vld [vmem:[%s0 + $0x4c] sm:$0xf]
    %v36 = vld [vmem:[%s0 + $0x50] sm:$0xf]
    %v37 = vld [vmem:[%s0 + $0x54] sm:$0xf]
    %v38 = vld [vmem:[%s0 + $0x58] sm:$0xf]
    %v39 = vld [vmem:[%s0 + $0x5c] sm:$0xf]
    %v40 = vld [vmem:[%s0 + $0x60] sm:$0xf]
    %v41 = vld [vmem:[%s0 + $0x64] sm:$0xf]
    %v42 = vld [vmem:[%s0 + $0x68] sm:$0xf]
    %v43 = vld [vmem:[%s0 + $0x6c] sm:$0xf]
    %v44 = vld [vmem:[%s0 + $0x70] sm:$0xf]
    %v45 = vld [vmem:[%s0 + $0x74] sm:$0xf]
    %v46 = vld [vmem:[%s0 + $0x78] sm:$0xf]
    %v47 = vld [vmem:[%s0 + $0x7c] sm:$0xf]
    %v48 = vld [vmem:[%s0 + $0x80] sm:$0xf]
    %v49 = vld [vmem:[%s0 + $0x84] sm:$0xf]
    %v50 = vld [vmem:[%s0 + $0x88] sm:$0xf]
    %v51 = vld [vmem:[%s0 + $0x8c] sm:$0xf]
    %v52 = vld [vmem:[%s0 + $0x90] sm:$0xf]
    %v53 = vld [vmem:[%s0 + $0x94] sm:$0xf]
    %v54 = vld [vmem:[%s0 + $0x98] sm:$0xf]
    %v55 = vld [vmem:[%s0 + $0x9c] sm:$0xf]
    %v56 = vld [vmem:[%s0 + $0xa0] sm:$0xf]
    %v57 = vld [vmem:[%s0 + $0xa4] sm:$0xf]
    %v58 = vld [vmem:[%s0 + $0xa8] sm:$0xf]
    %v59 = vld [vmem:[%s0 + $0xac] sm:$0xf]
    %v60 = vld [vmem:[%s0 + $0xb0] sm:$0xf]
    %v61 = vld [vmem:[%s0 + $0xb4] sm:$0xf]
    %v62 = vld [vmem:[%s0 + $0xb8] sm:$0xf]
    %v63 = vld [vmem:[%s0 + $0xbc] sm:$0xf]
    %v64 = vld [vmem:[%s0 + $0xc0] sm:$0xf]
    %v65 = vld [vmem:[%s0 + $0xc4] sm:$0xf]
    %v66 = vld [vmem:[%s0 + $0xc8] sm:$0xf]
    %v67 = vld [vmem:[%s0 + $0xcc] sm:$0xf]
    %v68 = vld [vmem:[%s0 + $0xd0] sm:$0xf]
    %v69 = vld [vmem:[%s0 + $0xd4] sm:$0xf]
    %v70 = vld [vmem:[%s0 + $0xd8] sm:$0xf]
    %v71 = vld [vmem:[%s0 + $0xdc] sm:$0xf]
    %v72 = vld [vmem:[%s0 + $0xe0] sm:$0xf]
    %v73 = vld [vmem:[%s0 + $0xe4] sm:$0xf]
    %v74 = vld [vmem:[%s0 + $0xe8] sm:$0xf]
    %v75 = vld [vmem:[%s0 + $0xec] sm:$0xf]
    %v76 = vld [vmem:[%s0 + $0xf0] sm:$0xf]
    %v77 = vld [vmem:[%s0 + $0xf4] sm:$0xf]
    %v78 = vld [vmem:[%s0 + $0xf8] sm:$0xf]
    %v79 = vld [vmem:[%s0 + $0xfc] sm:$0xf]
    %v80 = vld [vmem:[%s0 + $0x100] sm:$0xf]
    %v81 = vld [vmem:[%s0 + $0x104] sm:$0xf]
    %v82 = vld [vmem:[%s0 + $0x108] sm:$0xf]
    %v83 = vld [vmem:[%s0 + $0x10c] sm:$0xf]
    %v84 = vld [vmem:[%s0 + $0x110] sm:$0xf]
    %v85 = vld [vmem:[%s0 + $0x114] sm:$0xf]
    %v86 = vld [vmem:[%s0 + $0x118] sm:$0xf]
    %v87 = vld [vmem:[%s0 + $0x11c] sm:$0xf]
    %v88 = vld [vmem:[%s0 + $0x120] sm:$0xf]
    %v89 = vld [vmem:[%s0 + $0x124] sm:$0xf]
    %v90 = vld [vmem:[%s0 + $0x128] sm:$0xf]
    %v91 = vld [vmem:[%s0 + $0x12c] sm:$0xf]
    %v92 = vld [vmem:[%s0 + $0x130] sm:$0xf]
    %v93 = vld [vmem:[%s0 + $0x134] sm:$0xf]
    %v94 = vld [vmem:[%s0 + $0x138] sm:$0xf]
    %v95 = vld [vmem:[%s0 + $0x13c] sm:$0xf]
    %v96 = vld [vmem:[%s0 + $0x140] sm:$0xf]
    %v97 = vld [vmem:[%s0 + $0x144] sm:$0xf]
    %v98 = vld [vmem:[%s0 + $0x148] sm:$0xf]
    %v99 = vld [vmem:[%s0 + $0x14c] sm:$0xf]
    %v100 = vld [vmem:[%s0 + $0x150] sm:$0xf]
    %v101 = vld [vmem:[%s0 + $0x154] sm:$0xf]
    %v102 = vld [vmem:[%s0 + $0x158] sm:$0xf]
    %v103 = vld [vmem:[%s0 + $0x15c] sm:$0xf]
    %v104 = vld [vmem:[%s0 + $0x160] sm:$0xf]
    %v105 = vld [vmem:[%s0 + $0x164] sm:$0xf]
    %v106 = vld [vmem:[%s0 + $0x168] sm:$0xf]
    %v107 = vld [vmem:[%s0 + $0x16c] sm:$0xf]
    %v108 = vld [vmem:[%s0 + $0x170] sm:$0xf]
    %v109 = vld [vmem:[%s0 + $0x174] sm:$0xf]
    %v110 = vld [vmem:[%s0 + $0x178] sm:$0xf]
    %v111 = vld [vmem:[%s0 + $0x17c] sm:$0xf]
    %v112 = vld [vmem:[%s0 + $0x180] sm:$0xf]
    %v113 = vld [vmem:[%s0 + $0x184] sm:$0xf]
    %v114 = vld [vmem:[%s0 + $0x188] sm:$0xf]
    %v115 = vld [vmem:[%s0 + $0x18c] sm:$0xf]
    %v116 = vld [vmem:[%s0 + $0x190] sm:$0xf]
    %v117 = vld [vmem:[%s0 + $0x194] sm:$0xf]
    %v118 = vld [vmem:[%s0 + $0x198] sm:$0xf]
    %v119 = vld [vmem:[%s0 + $0x19c] sm:$0xf]
    %v120 = vld [vmem:[%s0 + $0x1a0] sm:$0xf]
    %v121 = vld [vmem:[%s0 + $0x1a4] sm:$0xf]
    %v122 = vld [vmem:[%s0 + $0x1a8] sm:$0xf]
    %v123 = vld [vmem:[%s0 + $0x1ac] sm:$0xf]
    %v124 = vld [vmem:[%s0 + $0x1b0] sm:$0xf]
    %v125 = vld [vmem:[%s0 + $0x1b4] sm:$0xf]
    %v126 = vld [vmem:[%s0 + $0x1b8] sm:$0xf]
    %v127 = vld [vmem:[%s0 + $0x1bc] sm:$0xf]
    %v128 = vld [vmem:[%s0 + $0x1c0] sm:$0xf]
    %v129 = vld [vmem:[%s0 + $0x1c4] sm:$0xf]
    %v130 = vld [vmem:[%s0 + $0x1c8] sm:$0xf]
    %v131 = vld [vmem:[%s0 + $0x1cc] sm:$0xf]
    %v132 = vld [vmem:[%s0 + $0x1d0] sm:$0xf]
    %v133 = vld [vmem:[%s0 + $0x1d4] sm:$0xf]
    %v134 = vld [vmem:[%s0 + $0x1d8] sm:$0xf]
    %v135 = vld [vmem:[%s0 + $0x1dc] sm:$0xf]
    %v136 = vld [vmem:[%s0 + $0x1e0] sm:$0xf]
    %v137 = vld [vmem:[%s0 + $0x1e4] sm:$0xf]
    %v138 = vld [vmem:[%s0 + $0x1e8] sm:$0xf]
    %v139 = vld [vmem:[%s0 + $0x1ec] sm:$0xf]
    %v140 = vld [vmem:[%s0 + $0x1f0] sm:$0xf]
    %v141 = vld [vmem:[%s0 + $0x1f4] sm:$0xf]
    %v142 = vld [vmem:[%s0 + $0x1f8] sm:$0xf]
    %v143 = vld [vmem:[%s0 + $0x1fc] sm:$0xf]
    %v144 = vld [vmem:[%s1] sm:$0xf]
    %v145 = vld [vmem:[%s1 + $0x4] sm:$0xf]
    %v146 = vld [vmem:[%s1 + $0x8] sm:$0xf]
    %v147 = vld [vmem:[%s1 + $0xc] sm:$0xf]
    %v148 = vld [vmem:[%s1 + $0x10] sm:$0xf]
    %v149 = vld [vmem:[%s1 + $0x14] sm:$0xf]
    %v150 = vld [vmem:[%s1 + $0x18] sm:$0xf]
    %v151 = vld [vmem:[%s1 + $0x1c] sm:$0xf]
    %v152 = vld [vmem:[%s2] sm:$0x1]
    %v154 = vlaneseq
    %v155 = vshrl.u32 %v154, 7
    %v156 = vsub.s32 0, %v155
    %v157 = vrot.slane %v152, %v156
    %v287 = vunpack.c.l.b16 %v16
    %v288 = vunpack.c.l.b16 %v17
    %v289 = vunpack.c.l.b16 %v18
    %v290 = vunpack.c.l.b16 %v19
    %v291 = vunpack.c.l.b16 %v20
    %v292 = vunpack.c.l.b16 %v21
    %v293 = vunpack.c.l.b16 %v22
    %v294 = vunpack.c.l.b16 %v23
    %v295 = vunpack.c.l.b16 %v24
    %v296 = vunpack.c.l.b16 %v25
    %v297 = vunpack.c.l.b16 %v26
    %v298 = vunpack.c.l.b16 %v27
    %v299 = vunpack.c.l.b16 %v28
    %v300 = vunpack.c.l.b16 %v29
    %v301 = vunpack.c.l.b16 %v30
    %v302 = vunpack.c.l.b16 %v31
    %v303 = vunpack.c.l.b16 %v32
    %v304 = vunpack.c.l.b16 %v33
    %v305 = vunpack.c.l.b16 %v34
    %v306 = vunpack.c.l.b16 %v35
    %v307 = vunpack.c.l.b16 %v36
    %v308 = vunpack.c.l.b16 %v37
    %v309 = vunpack.c.l.b16 %v38
    %v310 = vunpack.c.l.b16 %v39
    %v311 = vunpack.c.l.b16 %v40
    %v312 = vunpack.c.l.b16 %v41
    %v313 = vunpack.c.l.b16 %v42
    %v314 = vunpack.c.l.b16 %v43
    %v315 = vunpack.c.l.b16 %v44
    %v316 = vunpack.c.l.b16 %v45
    %v317 = vunpack.c.l.b16 %v46
    %v318 = vunpack.c.l.b16 %v47
    %v319 = vunpack.c.l.b16 %v48
    %v320 = vunpack.c.l.b16 %v49
    %v321 = vunpack.c.l.b16 %v50
    %v322 = vunpack.c.l.b16 %v51
    %v323 = vunpack.c.l.b16 %v52
    %v324 = vunpack.c.l.b16 %v53
    %v325 = vunpack.c.l.b16 %v54
    %v326 = vunpack.c.l.b16 %v55
    %v327 = vunpack.c.l.b16 %v56
    %v328 = vunpack.c.l.b16 %v57
    %v329 = vunpack.c.l.b16 %v58
    %v330 = vunpack.c.l.b16 %v59
    %v331 = vunpack.c.l.b16 %v60
    %v332 = vunpack.c.l.b16 %v61
    %v333 = vunpack.c.l.b16 %v62
    %v334 = vunpack.c.l.b16 %v63
    %v335 = vunpack.c.l.b16 %v64
    %v336 = vunpack.c.l.b16 %v65
    %v337 = vunpack.c.l.b16 %v66
    %v338 = vunpack.c.l.b16 %v67
    %v339 = vunpack.c.l.b16 %v68
    %v340 = vunpack.c.l.b16 %v69
    %v341 = vunpack.c.l.b16 %v70
    %v342 = vunpack.c.l.b16 %v71
    %v343 = vunpack.c.l.b16 %v72
    %v344 = vunpack.c.l.b16 %v73
    %v345 = vunpack.c.l.b16 %v74
    %v346 = vunpack.c.l.b16 %v75
    %v347 = vunpack.c.l.b16 %v76
    %v348 = vunpack.c.l.b16 %v77
    %v349 = vunpack.c.l.b16 %v78
    %v350 = vunpack.c.l.b16 %v79
    %v351 = vunpack.c.l.b16 %v80
    %v352 = vunpack.c.l.b16 %v81
    %v353 = vunpack.c.l.b16 %v82
    %v354 = vunpack.c.l.b16 %v83
    %v355 = vunpack.c.l.b16 %v84
    %v356 = vunpack.c.l.b16 %v85
    %v357 = vunpack.c.l.b16 %v86
    %v358 = vunpack.c.l.b16 %v87
    %v359 = vunpack.c.l.b16 %v88
    %v360 = vunpack.c.l.b16 %v89
    %v361 = vunpack.c.l.b16 %v90
    %v362 = vunpack.c.l.b16 %v91
    %v363 = vunpack.c.l.b16 %v92
    %v364 = vunpack.c.l.b16 %v93
    %v365 = vunpack.c.l.b16 %v94
    %v366 = vunpack.c.l.b16 %v95
    %v367 = vunpack.c.l.b16 %v96
    %v368 = vunpack.c.l.b16 %v97
    %v369 = vunpack.c.l.b16 %v98
    %v370 = vunpack.c.l.b16 %v99
    %v371 = vunpack.c.l.b16 %v100
    %v372 = vunpack.c.l.b16 %v101
    %v373 = vunpack.c.l.b16 %v102
    %v374 = vunpack.c.l.b16 %v103
    %v375 = vunpack.c.l.b16 %v104
    %v376 = vunpack.c.l.b16 %v105
    %v377 = vunpack.c.l.b16 %v106
    %v378 = vunpack.c.l.b16 %v107
    %v379 = vunpack.c.l.b16 %v108
    %v380 = vunpack.c.l.b16 %v109
    %v381 = vunpack.c.l.b16 %v110
    %v382 = vunpack.c.l.b16 %v111
    %v383 = vunpack.c.l.b16 %v112
    %v384 = vunpack.c.l.b16 %v113
    %v385 = vunpack.c.l.b16 %v114
    %v386 = vunpack.c.l.b16 %v115
    %v387 = vunpack.c.l.b16 %v116
    %v388 = vunpack.c.l.b16 %v117
    %v389 = vunpack.c.l.b16 %v118
    %v390 = vunpack.c.l.b16 %v119
    %v391 = vunpack.c.l.b16 %v120
    %v392 = vunpack.c.l.b16 %v121
    %v393 = vunpack.c.l.b16 %v122
    %v394 = vunpack.c.l.b16 %v123
    %v395 = vunpack.c.l.b16 %v124
    %v396 = vunpack.c.l.b16 %v125
    %v397 = vunpack.c.l.b16 %v126
    %v398 = vunpack.c.l.b16 %v127
    %v399 = vunpack.c.l.b16 %v128
    %v400 = vunpack.c.l.b16 %v129
    %v401 = vunpack.c.l.b16 %v130
    %v402 = vunpack.c.l.b16 %v131
    %v403 = vunpack.c.l.b16 %v132
    %v404 = vunpack.c.l.b16 %v133
    %v405 = vunpack.c.l.b16 %v134
    %v406 = vunpack.c.l.b16 %v135
    %v407 = vunpack.c.l.b16 %v136
    %v408 = vunpack.c.l.b16 %v137
    %v409 = vunpack.c.l.b16 %v138
    %v410 = vunpack.c.l.b16 %v139
    %v411 = vunpack.c.l.b16 %v140
    %v412 = vunpack.c.l.b16 %v141
    %v413 = vunpack.c.l.b16 %v142
    %v414 = vunpack.c.l.b16 %v143
    %v415 = vpack.c.b16 %v288, %v287
    %v416 = vpack.c.b16 %v290, %v289
    %v417 = vpack.c.b16 %v292, %v291
    %v418 = vpack.c.b16 %v294, %v293
    %v419 = vpack.c.b16 %v296, %v295
    %v420 = vpack.c.b16 %v298, %v297
    %v421 = vpack.c.b16 %v300, %v299
    %v422 = vpack.c.b16 %v302, %v301
    %v423 = vpack.c.b16 %v304, %v303
    %v424 = vpack.c.b16 %v306, %v305
    %v425 = vpack.c.b16 %v308, %v307
    %v426 = vpack.c.b16 %v310, %v309
    %v427 = vpack.c.b16 %v312, %v311
    %v428 = vpack.c.b16 %v314, %v313
    %v429 = vpack.c.b16 %v316, %v315
    %v430 = vpack.c.b16 %v318, %v317
    %v431 = vpack.c.b16 %v320, %v319
    %v432 = vpack.c.b16 %v322, %v321
    %v433 = vpack.c.b16 %v324, %v323
    %v434 = vpack.c.b16 %v326, %v325
    %v435 = vpack.c.b16 %v328, %v327
    %v436 = vpack.c.b16 %v330, %v329
    %v437 = vpack.c.b16 %v332, %v331
    %v438 = vpack.c.b16 %v334, %v333
    %v439 = vpack.c.b16 %v336, %v335
    %v440 = vpack.c.b16 %v338, %v337
    %v441 = vpack.c.b16 %v340, %v339
    %v442 = vpack.c.b16 %v342, %v341
    %v443 = vpack.c.b16 %v344, %v343
    %v444 = vpack.c.b16 %v346, %v345
    %v445 = vpack.c.b16 %v348, %v347
    %v446 = vpack.c.b16 %v350, %v349
    %v447 = vpack.c.b16 %v352, %v351
    %v448 = vpack.c.b16 %v354, %v353
    %v449 = vpack.c.b16 %v356, %v355
    %v450 = vpack.c.b16 %v358, %v357
    %v451 = vpack.c.b16 %v360, %v359
    %v452 = vpack.c.b16 %v362, %v361
    %v453 = vpack.c.b16 %v364, %v363
    %v454 = vpack.c.b16 %v366, %v365
    %v455 = vpack.c.b16 %v368, %v367
    %v456 = vpack.c.b16 %v370, %v369
    %v457 = vpack.c.b16 %v372, %v371
    %v458 = vpack.c.b16 %v374, %v373
    %v459 = vpack.c.b16 %v376, %v375
    %v460 = vpack.c.b16 %v378, %v377
    %v461 = vpack.c.b16 %v380, %v379
    %v462 = vpack.c.b16 %v382, %v381
    %v463 = vpack.c.b16 %v384, %v383
    %v464 = vpack.c.b16 %v386, %v385
    %v465 = vpack.c.b16 %v388, %v387
    %v466 = vpack.c.b16 %v390, %v389
    %v467 = vpack.c.b16 %v392, %v391
    %v468 = vpack.c.b16 %v394, %v393
    %v469 = vpack.c.b16 %v396, %v395
    %v470 = vpack.c.b16 %v398, %v397
    %v471 = vpack.c.b16 %v400, %v399
    %v472 = vpack.c.b16 %v402, %v401
    %v473 = vpack.c.b16 %v404, %v403
    %v474 = vpack.c.b16 %v406, %v405
    %v475 = vpack.c.b16 %v408, %v407
    %v476 = vpack.c.b16 %v410, %v409
    %v477 = vpack.c.b16 %v412, %v411
    %v478 = vpack.c.b16 %v414, %v413
    %v487 = vunpack.c.l.b16 %v144
    %v488 = vunpack.c.l.b16 %v145
    %v489 = vunpack.c.l.b16 %v146
    %v490 = vunpack.c.l.b16 %v147
    %v491 = vunpack.c.l.b16 %v148
    %v492 = vunpack.c.l.b16 %v149
    %v493 = vunpack.c.l.b16 %v150
    %v494 = vunpack.c.l.b16 %v151
    %v495 = vpack.c.b16 %v488, %v487
    %v496 = vpack.c.b16 %v490, %v489
    %v497 = vpack.c.b16 %v492, %v491
    %v498 = vpack.c.b16 %v494, %v493
    %vm503 = vcmask 523264
    %v505 = vsel %vm503, %v415, 0
    %v508 = vsel %vm503, %v416, 0
    %v511 = vsel %vm503, %v417, 0
    %v514 = vsel %vm503, %v418, 0
    %v517 = vsel %vm503, %v419, 0
    %v520 = vsel %vm503, %v420, 0
    %v523 = vsel %vm503, %v421, 0
    %v526 = vsel %vm503, %v422, 0
    %v529 = vsel %vm503, %v423, 0
    %v532 = vsel %vm503, %v424, 0
    %v535 = vsel %vm503, %v425, 0
    %v538 = vsel %vm503, %v426, 0
    %v541 = vsel %vm503, %v427, 0
    %v544 = vsel %vm503, %v428, 0
    %v547 = vsel %vm503, %v429, 0
    %v550 = vsel %vm503, %v430, 0
    %v553 = vsel %vm503, %v431, 0
    %v556 = vsel %vm503, %v432, 0
    %v559 = vsel %vm503, %v433, 0
    %v562 = vsel %vm503, %v434, 0
    %v565 = vsel %vm503, %v435, 0
    %v568 = vsel %vm503, %v436, 0
    %v571 = vsel %vm503, %v437, 0
    %v574 = vsel %vm503, %v438, 0
    %v577 = vsel %vm503, %v439, 0
    %v580 = vsel %vm503, %v440, 0
    %v583 = vsel %vm503, %v441, 0
    %v586 = vsel %vm503, %v442, 0
    %v589 = vsel %vm503, %v443, 0
    %v592 = vsel %vm503, %v444, 0
    %v595 = vsel %vm503, %v445, 0
    %v598 = vsel %vm503, %v446, 0
    %v601 = vsel %vm503, %v447, 0
    %v604 = vsel %vm503, %v448, 0
    %v607 = vsel %vm503, %v449, 0
    %v610 = vsel %vm503, %v450, 0
    %v613 = vsel %vm503, %v451, 0
    %v616 = vsel %vm503, %v452, 0
    %v619 = vsel %vm503, %v453, 0
    %v622 = vsel %vm503, %v454, 0
    %v625 = vsel %vm503, %v455, 0
    %v628 = vsel %vm503, %v456, 0
    %v631 = vsel %vm503, %v457, 0
    %v634 = vsel %vm503, %v458, 0
    %v637 = vsel %vm503, %v459, 0
    %v640 = vsel %vm503, %v460, 0
    %v643 = vsel %vm503, %v461, 0
    %v646 = vsel %vm503, %v462, 0
    %v649 = vsel %vm503, %v463, 0
    %v652 = vsel %vm503, %v464, 0
    %v655 = vsel %vm503, %v465, 0
    %v658 = vsel %vm503, %v466, 0
    %v661 = vsel %vm503, %v467, 0
    %v664 = vsel %vm503, %v468, 0
    %v667 = vsel %vm503, %v469, 0
    %v670 = vsel %vm503, %v470, 0
    %v673 = vsel %vm503, %v471, 0
    %v676 = vsel %vm503, %v472, 0
    %v679 = vsel %vm503, %v473, 0
    %v682 = vsel %vm503, %v474, 0
    %v685 = vsel %vm503, %v475, 0
    %v688 = vsel %vm503, %v476, 0
    %v691 = vsel %vm503, %v477, 0
    %v694 = vsel %vm503, %v478, 0
    %696 = vmatprep.subr.bf16.mxu0 0
    %697 = vmatpush1.bf16.msra.mxu0 0
    %698 = vmatprep.subr.bf16.mxu0 0
    %699 = vmatpush1.bf16.msra.mxu0 0
    %700 = vmatprep.subr.bf16.mxu0 0
    %701 = vmatpush1.bf16.msra.mxu0 0
    %702 = vmatprep.subr.bf16.mxu0 0
    %703 = vmatpush1.bf16.msra.mxu0 0
    %704 = vmatprep.subr.bf16.mxu0 0
    %705 = vmatpush1.bf16.msra.mxu0 %v498
    %706 = vmatprep.subr.bf16.mxu0 0
    %707 = vmatpush1.bf16.msra.mxu0 %v497
    %708 = vmatprep.subr.bf16.mxu0 0
    %709 = vmatpush1.bf16.msra.mxu0 %v496
    %710 = vmatprep.subr.bf16.mxu0 0
    %711 = vmatpush1.bf16.msra.mxu0 %v495
    %712 = vmatprep.subr.bf16.mxu0 0
    %713 = vmatpush2.bf16.msra.mxu0 0
    %714 = vmatprep.subr.bf16.mxu0 0
    %715 = vmatpush2.bf16.msra.mxu0 0
    %716 = vmatprep.subr.bf16.mxu0 0
    %717 = vmatpush2.bf16.msra.mxu0 0
    %718 = vmatprep.subr.bf16.mxu0 0
    %719 = vmatpush2.bf16.msra.mxu0 0
    %720 = vmatprep.subr.bf16.mxu0 0
    %721 = vmatpush2.bf16.msra.mxu0 0
    %722 = vmatprep.subr.bf16.mxu0 0
    %723 = vmatpush2.bf16.msra.mxu0 0
    %724 = vmatprep.subr.bf16.mxu0 0
    %725 = vmatpush2.bf16.msra.mxu0 0
    %726 = vmatprep.subr.bf16.mxu0 0
    %727 = vmatpush2.bf16.msra.mxu0 0
    %728 = vmatprep.mubr.bf16.mxu0 0
    %729 = vmatmul.mubr.bf16.gmra.mxu0 %v505
    %v730 = vpop.f32.mrf.mxu0
    %v731 = vadd.f32 %v157, %v730
    %v732 = vpop.f32.mrf.mxu0
    %v733 = vpop.f32.mrf.mxu0
    %v734 = vadd.f32 %v157, %v733
    %v735 = vpop.f32.mrf.mxu0
    %736 = vmatprep.mubr.bf16.mxu0 0
    %737 = vmatmul.mubr.bf16.gmra.mxu0 %v508
    %v738 = vpop.f32.mrf.mxu0
    %v739 = vadd.f32 %v157, %v738
    %v740 = vpop.f32.mrf.mxu0
    %v741 = vpop.f32.mrf.mxu0
    %v742 = vadd.f32 %v157, %v741
    %v743 = vpop.f32.mrf.mxu0
    %744 = vmatprep.mubr.bf16.mxu0 0
    %745 = vmatmul.mubr.bf16.gmra.mxu0 %v511
    %v746 = vpop.f32.mrf.mxu0
    %v747 = vadd.f32 %v157, %v746
    %v748 = vpop.f32.mrf.mxu0
    %v749 = vpop.f32.mrf.mxu0
    %v750 = vadd.f32 %v157, %v749
    %v751 = vpop.f32.mrf.mxu0
    %752 = vmatprep.mubr.bf16.mxu0 0
    %753 = vmatmul.mubr.bf16.gmra.mxu0 %v514
    %v754 = vpop.f32.mrf.mxu0
    %v755 = vadd.f32 %v157, %v754
    %v756 = vpop.f32.mrf.mxu0
    %v757 = vpop.f32.mrf.mxu0
    %v758 = vadd.f32 %v157, %v757
    %v759 = vpop.f32.mrf.mxu0
    %760 = vmatprep.mubr.bf16.mxu0 0
    %761 = vmatmul.mubr.bf16.gmra.mxu0 %v517
    %v762 = vpop.f32.mrf.mxu0
    %v763 = vadd.f32 %v157, %v762
    %v764 = vpop.f32.mrf.mxu0
    %v765 = vpop.f32.mrf.mxu0
    %v766 = vadd.f32 %v157, %v765
    %v767 = vpop.f32.mrf.mxu0
    %768 = vmatprep.mubr.bf16.mxu0 0
    %769 = vmatmul.mubr.bf16.gmra.mxu0 %v520
    %v770 = vpop.f32.mrf.mxu0
    %v771 = vadd.f32 %v157, %v770
    %v772 = vpop.f32.mrf.mxu0
    %v773 = vpop.f32.mrf.mxu0
    %v774 = vadd.f32 %v157, %v773
    %v775 = vpop.f32.mrf.mxu0
    %776 = vmatprep.mubr.bf16.mxu0 0
    %777 = vmatmul.mubr.bf16.gmra.mxu0 %v523
    %v778 = vpop.f32.mrf.mxu0
    %v779 = vadd.f32 %v157, %v778
    %v780 = vpop.f32.mrf.mxu0
    %v781 = vpop.f32.mrf.mxu0
    %v782 = vadd.f32 %v157, %v781
    %v783 = vpop.f32.mrf.mxu0
    %784 = vmatprep.mubr.bf16.mxu0 0
    %785 = vmatmul.mubr.bf16.gmra.mxu0 %v526
    %v786 = vpop.f32.mrf.mxu0
    %v787 = vadd.f32 %v157, %v786
    %v788 = vpop.f32.mrf.mxu0
    %v789 = vpop.f32.mrf.mxu0
    %v790 = vadd.f32 %v157, %v789
    %v791 = vpop.f32.mrf.mxu0
    %792 = vmatprep.mubr.bf16.mxu0 0
    %793 = vmatmul.mubr.bf16.gmra.mxu0 %v529
    %v794 = vpop.f32.mrf.mxu0
    %v795 = vadd.f32 %v157, %v794
    %v796 = vpop.f32.mrf.mxu0
    %v797 = vpop.f32.mrf.mxu0
    %v798 = vadd.f32 %v157, %v797
    %v799 = vpop.f32.mrf.mxu0
    %800 = vmatprep.mubr.bf16.mxu0 0
    %801 = vmatmul.mubr.bf16.gmra.mxu0 %v532
    %v802 = vpop.f32.mrf.mxu0
    %v803 = vadd.f32 %v157, %v802
    %v804 = vpop.f32.mrf.mxu0
    %v805 = vpop.f32.mrf.mxu0
    %v806 = vadd.f32 %v157, %v805
    %v807 = vpop.f32.mrf.mxu0
    %808 = vmatprep.mubr.bf16.mxu0 0
    %809 = vmatmul.mubr.bf16.gmra.mxu0 %v535
    %v810 = vpop.f32.mrf.mxu0
    %v811 = vadd.f32 %v157, %v810
    %v812 = vpop.f32.mrf.mxu0
    %v813 = vpop.f32.mrf.mxu0
    %v814 = vadd.f32 %v157, %v813
    %v815 = vpop.f32.mrf.mxu0
    %816 = vmatprep.mubr.bf16.mxu0 0
    %817 = vmatmul.mubr.bf16.gmra.mxu0 %v538
    %v818 = vpop.f32.mrf.mxu0
    %v819 = vadd.f32 %v157, %v818
    %v820 = vpop.f32.mrf.mxu0
    %v821 = vpop.f32.mrf.mxu0
    %v822 = vadd.f32 %v157, %v821
    %v823 = vpop.f32.mrf.mxu0
    %824 = vmatprep.mubr.bf16.mxu0 0
    %825 = vmatmul.mubr.bf16.gmra.mxu0 %v541
    %v826 = vpop.f32.mrf.mxu0
    %v827 = vadd.f32 %v157, %v826
    %v828 = vpop.f32.mrf.mxu0
    %v829 = vpop.f32.mrf.mxu0
    %v830 = vadd.f32 %v157, %v829
    %v831 = vpop.f32.mrf.mxu0
    %832 = vmatprep.mubr.bf16.mxu0 0
    %833 = vmatmul.mubr.bf16.gmra.mxu0 %v544
    %v834 = vpop.f32.mrf.mxu0
    %v835 = vadd.f32 %v157, %v834
    %v836 = vpop.f32.mrf.mxu0
    %v837 = vpop.f32.mrf.mxu0
    %v838 = vadd.f32 %v157, %v837
    %v839 = vpop.f32.mrf.mxu0
    %840 = vmatprep.mubr.bf16.mxu0 0
    %841 = vmatmul.mubr.bf16.gmra.mxu0 %v547
    %v842 = vpop.f32.mrf.mxu0
    %v843 = vadd.f32 %v157, %v842
    %v844 = vpop.f32.mrf.mxu0
    %v845 = vpop.f32.mrf.mxu0
    %v846 = vadd.f32 %v157, %v845
    %v847 = vpop.f32.mrf.mxu0
    %848 = vmatprep.mubr.bf16.mxu0 0
    %849 = vmatmul.mubr.bf16.gmra.mxu0 %v550
    %v850 = vpop.f32.mrf.mxu0
    %v851 = vadd.f32 %v157, %v850
    %v852 = vpop.f32.mrf.mxu0
    %v853 = vpop.f32.mrf.mxu0
    %v854 = vadd.f32 %v157, %v853
    %v855 = vpop.f32.mrf.mxu0
    %856 = vmatprep.mubr.bf16.mxu0 0
    %857 = vmatmul.mubr.bf16.gmra.mxu0 %v553
    %v858 = vpop.f32.mrf.mxu0
    %v859 = vadd.f32 %v157, %v858
    %v860 = vpop.f32.mrf.mxu0
    %v861 = vpop.f32.mrf.mxu0
    %v862 = vadd.f32 %v157, %v861
    %v863 = vpop.f32.mrf.mxu0
    %864 = vmatprep.mubr.bf16.mxu0 0
    %865 = vmatmul.mubr.bf16.gmra.mxu0 %v556
    %v866 = vpop.f32.mrf.mxu0
    %v867 = vadd.f32 %v157, %v866
    %v868 = vpop.f32.mrf.mxu0
    %v869 = vpop.f32.mrf.mxu0
    %v870 = vadd.f32 %v157, %v869
    %v871 = vpop.f32.mrf.mxu0
    %872 = vmatprep.mubr.bf16.mxu0 0
    %873 = vmatmul.mubr.bf16.gmra.mxu0 %v559
    %v874 = vpop.f32.mrf.mxu0
    %v875 = vadd.f32 %v157, %v874
    %v876 = vpop.f32.mrf.mxu0
    %v877 = vpop.f32.mrf.mxu0
    %v878 = vadd.f32 %v157, %v877
    %v879 = vpop.f32.mrf.mxu0
    %880 = vmatprep.mubr.bf16.mxu0 0
    %881 = vmatmul.mubr.bf16.gmra.mxu0 %v562
    %v882 = vpop.f32.mrf.mxu0
    %v883 = vadd.f32 %v157, %v882
    %v884 = vpop.f32.mrf.mxu0
    %v885 = vpop.f32.mrf.mxu0
    %v886 = vadd.f32 %v157, %v885
    %v887 = vpop.f32.mrf.mxu0
    %888 = vmatprep.mubr.bf16.mxu0 0
    %889 = vmatmul.mubr.bf16.gmra.mxu0 %v565
    %v890 = vpop.f32.mrf.mxu0
    %v891 = vadd.f32 %v157, %v890
    %v892 = vpop.f32.mrf.mxu0
    %v893 = vpop.f32.mrf.mxu0
    %v894 = vadd.f32 %v157, %v893
    %v895 = vpop.f32.mrf.mxu0
    %896 = vmatprep.mubr.bf16.mxu0 0
    %897 = vmatmul.mubr.bf16.gmra.mxu0 %v568
    %v898 = vpop.f32.mrf.mxu0
    %v899 = vadd.f32 %v157, %v898
    %v900 = vpop.f32.mrf.mxu0
    %v901 = vpop.f32.mrf.mxu0
    %v902 = vadd.f32 %v157, %v901
    %v903 = vpop.f32.mrf.mxu0
    %904 = vmatprep.mubr.bf16.mxu0 0
    %905 = vmatmul.mubr.bf16.gmra.mxu0 %v571
    %v906 = vpop.f32.mrf.mxu0
    %v907 = vadd.f32 %v157, %v906
    %v908 = vpop.f32.mrf.mxu0
    %v909 = vpop.f32.mrf.mxu0
    %v910 = vadd.f32 %v157, %v909
    %v911 = vpop.f32.mrf.mxu0
    %912 = vmatprep.mubr.bf16.mxu0 0
    %913 = vmatmul.mubr.bf16.gmra.mxu0 %v574
    %v914 = vpop.f32.mrf.mxu0
    %v915 = vadd.f32 %v157, %v914
    %v916 = vpop.f32.mrf.mxu0
    %v917 = vpop.f32.mrf.mxu0
    %v918 = vadd.f32 %v157, %v917
    %v919 = vpop.f32.mrf.mxu0
    %920 = vmatprep.mubr.bf16.mxu0 0
    %921 = vmatmul.mubr.bf16.gmra.mxu0 %v577
    %v922 = vpop.f32.mrf.mxu0
    %v923 = vadd.f32 %v157, %v922
    %v924 = vpop.f32.mrf.mxu0
    %v925 = vpop.f32.mrf.mxu0
    %v926 = vadd.f32 %v157, %v925
    %v927 = vpop.f32.mrf.mxu0
    %928 = vmatprep.mubr.bf16.mxu0 0
    %929 = vmatmul.mubr.bf16.gmra.mxu0 %v580
    %v930 = vpop.f32.mrf.mxu0
    %v931 = vadd.f32 %v157, %v930
    %v932 = vpop.f32.mrf.mxu0
    %v933 = vpop.f32.mrf.mxu0
    %v934 = vadd.f32 %v157, %v933
    %v935 = vpop.f32.mrf.mxu0
    %936 = vmatprep.mubr.bf16.mxu0 0
    %937 = vmatmul.mubr.bf16.gmra.mxu0 %v583
    %v938 = vpop.f32.mrf.mxu0
    %v939 = vadd.f32 %v157, %v938
    %v940 = vpop.f32.mrf.mxu0
    %v941 = vpop.f32.mrf.mxu0
    %v942 = vadd.f32 %v157, %v941
    %v943 = vpop.f32.mrf.mxu0
    %944 = vmatprep.mubr.bf16.mxu0 0
    %945 = vmatmul.mubr.bf16.gmra.mxu0 %v586
    %v946 = vpop.f32.mrf.mxu0
    %v947 = vadd.f32 %v157, %v946
    %v948 = vpop.f32.mrf.mxu0
    %v949 = vpop.f32.mrf.mxu0
    %v950 = vadd.f32 %v157, %v949
    %v951 = vpop.f32.mrf.mxu0
    %952 = vmatprep.mubr.bf16.mxu0 0
    %953 = vmatmul.mubr.bf16.gmra.mxu0 %v589
    %v954 = vpop.f32.mrf.mxu0
    %v955 = vadd.f32 %v157, %v954
    %v956 = vpop.f32.mrf.mxu0
    %v957 = vpop.f32.mrf.mxu0
    %v958 = vadd.f32 %v157, %v957
    %v959 = vpop.f32.mrf.mxu0
    %960 = vmatprep.mubr.bf16.mxu0 0
    %961 = vmatmul.mubr.bf16.gmra.mxu0 %v592
    %v962 = vpop.f32.mrf.mxu0
    %v963 = vadd.f32 %v157, %v962
    %v964 = vpop.f32.mrf.mxu0
    %v965 = vpop.f32.mrf.mxu0
    %v966 = vadd.f32 %v157, %v965
    %v967 = vpop.f32.mrf.mxu0
    %968 = vmatprep.mubr.bf16.mxu0 0
    %969 = vmatmul.mubr.bf16.gmra.mxu0 %v595
    %v970 = vpop.f32.mrf.mxu0
    %v971 = vadd.f32 %v157, %v970
    %v972 = vpop.f32.mrf.mxu0
    %v973 = vpop.f32.mrf.mxu0
    %v974 = vadd.f32 %v157, %v973
    %v975 = vpop.f32.mrf.mxu0
    %976 = vmatprep.mubr.bf16.mxu0 0
    %977 = vmatmul.mubr.bf16.gmra.mxu0 %v598
    %v978 = vpop.f32.mrf.mxu0
    %v979 = vadd.f32 %v157, %v978
    %v980 = vpop.f32.mrf.mxu0
    %v981 = vpop.f32.mrf.mxu0
    %v982 = vadd.f32 %v157, %v981
    %v983 = vpop.f32.mrf.mxu0
    %984 = vmatprep.mubr.bf16.mxu0 0
    %985 = vmatmul.mubr.bf16.gmra.mxu0 %v601
    %v986 = vpop.f32.mrf.mxu0
    %v987 = vadd.f32 %v157, %v986
    %v988 = vpop.f32.mrf.mxu0
    %v989 = vpop.f32.mrf.mxu0
    %v990 = vadd.f32 %v157, %v989
    %v991 = vpop.f32.mrf.mxu0
    %992 = vmatprep.mubr.bf16.mxu0 0
    %993 = vmatmul.mubr.bf16.gmra.mxu0 %v604
    %v994 = vpop.f32.mrf.mxu0
    %v995 = vadd.f32 %v157, %v994
    %v996 = vpop.f32.mrf.mxu0
    %v997 = vpop.f32.mrf.mxu0
    %v998 = vadd.f32 %v157, %v997
    %v999 = vpop.f32.mrf.mxu0
    %1000 = vmatprep.mubr.bf16.mxu0 0
    %1001 = vmatmul.mubr.bf16.gmra.mxu0 %v607
    %v1002 = vpop.f32.mrf.mxu0
    %v1003 = vadd.f32 %v157, %v1002
    %v1004 = vpop.f32.mrf.mxu0
    %v1005 = vpop.f32.mrf.mxu0
    %v1006 = vadd.f32 %v157, %v1005
    %v1007 = vpop.f32.mrf.mxu0
    %1008 = vmatprep.mubr.bf16.mxu0 0
    %1009 = vmatmul.mubr.bf16.gmra.mxu0 %v610
    %v1010 = vpop.f32.mrf.mxu0
    %v1011 = vadd.f32 %v157, %v1010
    %v1012 = vpop.f32.mrf.mxu0
    %v1013 = vpop.f32.mrf.mxu0
    %v1014 = vadd.f32 %v157, %v1013
    %v1015 = vpop.f32.mrf.mxu0
    %1016 = vmatprep.mubr.bf16.mxu0 0
    %1017 = vmatmul.mubr.bf16.gmra.mxu0 %v613
    %v1018 = vpop.f32.mrf.mxu0
    %v1019 = vadd.f32 %v157, %v1018
    %v1020 = vpop.f32.mrf.mxu0
    %v1021 = vpop.f32.mrf.mxu0
    %v1022 = vadd.f32 %v157, %v1021
    %v1023 = vpop.f32.mrf.mxu0
    %1024 = vmatprep.mubr.bf16.mxu0 0
    %1025 = vmatmul.mubr.bf16.gmra.mxu0 %v616
    %v1026 = vpop.f32.mrf.mxu0
    %v1027 = vadd.f32 %v157, %v1026
    %v1028 = vpop.f32.mrf.mxu0
    %v1029 = vpop.f32.mrf.mxu0
    %v1030 = vadd.f32 %v157, %v1029
    %v1031 = vpop.f32.mrf.mxu0
    %1032 = vmatprep.mubr.bf16.mxu0 0
    %1033 = vmatmul.mubr.bf16.gmra.mxu0 %v619
    %v1034 = vpop.f32.mrf.mxu0
    %v1035 = vadd.f32 %v157, %v1034
    %v1036 = vpop.f32.mrf.mxu0
    %v1037 = vpop.f32.mrf.mxu0
    %v1038 = vadd.f32 %v157, %v1037
    %v1039 = vpop.f32.mrf.mxu0
    %1040 = vmatprep.mubr.bf16.mxu0 0
    %1041 = vmatmul.mubr.bf16.gmra.mxu0 %v622
    %v1042 = vpop.f32.mrf.mxu0
    %v1043 = vadd.f32 %v157, %v1042
    %v1044 = vpop.f32.mrf.mxu0
    %v1045 = vpop.f32.mrf.mxu0
    %v1046 = vadd.f32 %v157, %v1045
    %v1047 = vpop.f32.mrf.mxu0
    %1048 = vmatprep.mubr.bf16.mxu0 0
    %1049 = vmatmul.mubr.bf16.gmra.mxu0 %v625
    %v1050 = vpop.f32.mrf.mxu0
    %v1051 = vadd.f32 %v157, %v1050
    %v1052 = vpop.f32.mrf.mxu0
    %v1053 = vpop.f32.mrf.mxu0
    %v1054 = vadd.f32 %v157, %v1053
    %v1055 = vpop.f32.mrf.mxu0
    %1056 = vmatprep.mubr.bf16.mxu0 0
    %1057 = vmatmul.mubr.bf16.gmra.mxu0 %v628
    %v1058 = vpop.f32.mrf.mxu0
    %v1059 = vadd.f32 %v157, %v1058
    %v1060 = vpop.f32.mrf.mxu0
    %v1061 = vpop.f32.mrf.mxu0
    %v1062 = vadd.f32 %v157, %v1061
    %v1063 = vpop.f32.mrf.mxu0
    %1064 = vmatprep.mubr.bf16.mxu0 0
    %1065 = vmatmul.mubr.bf16.gmra.mxu0 %v631
    %v1066 = vpop.f32.mrf.mxu0
    %v1067 = vadd.f32 %v157, %v1066
    %v1068 = vpop.f32.mrf.mxu0
    %v1069 = vpop.f32.mrf.mxu0
    %v1070 = vadd.f32 %v157, %v1069
    %v1071 = vpop.f32.mrf.mxu0
    %1072 = vmatprep.mubr.bf16.mxu0 0
    %1073 = vmatmul.mubr.bf16.gmra.mxu0 %v634
    %v1074 = vpop.f32.mrf.mxu0
    %v1075 = vadd.f32 %v157, %v1074
    %v1076 = vpop.f32.mrf.mxu0
    %v1077 = vpop.f32.mrf.mxu0
    %v1078 = vadd.f32 %v157, %v1077
    %v1079 = vpop.f32.mrf.mxu0
    %1080 = vmatprep.mubr.bf16.mxu0 0
    %1081 = vmatmul.mubr.bf16.gmra.mxu0 %v637
    %v1082 = vpop.f32.mrf.mxu0
    %v1083 = vadd.f32 %v157, %v1082
    %v1084 = vpop.f32.mrf.mxu0
    %v1085 = vpop.f32.mrf.mxu0
    %v1086 = vadd.f32 %v157, %v1085
    %v1087 = vpop.f32.mrf.mxu0
    %1088 = vmatprep.mubr.bf16.mxu0 0
    %1089 = vmatmul.mubr.bf16.gmra.mxu0 %v640
    %v1090 = vpop.f32.mrf.mxu0
    %v1091 = vadd.f32 %v157, %v1090
    %v1092 = vpop.f32.mrf.mxu0
    %v1093 = vpop.f32.mrf.mxu0
    %v1094 = vadd.f32 %v157, %v1093
    %v1095 = vpop.f32.mrf.mxu0
    %1096 = vmatprep.mubr.bf16.mxu0 0
    %1097 = vmatmul.mubr.bf16.gmra.mxu0 %v643
    %v1098 = vpop.f32.mrf.mxu0
    %v1099 = vadd.f32 %v157, %v1098
    %v1100 = vpop.f32.mrf.mxu0
    %v1101 = vpop.f32.mrf.mxu0
    %v1102 = vadd.f32 %v157, %v1101
    %v1103 = vpop.f32.mrf.mxu0
    %1104 = vmatprep.mubr.bf16.mxu0 0
    %1105 = vmatmul.mubr.bf16.gmra.mxu0 %v646
    %v1106 = vpop.f32.mrf.mxu0
    %v1107 = vadd.f32 %v157, %v1106
    %v1108 = vpop.f32.mrf.mxu0
    %v1109 = vpop.f32.mrf.mxu0
    %v1110 = vadd.f32 %v157, %v1109
    %v1111 = vpop.f32.mrf.mxu0
    %1112 = vmatprep.mubr.bf16.mxu0 0
    %1113 = vmatmul.mubr.bf16.gmra.mxu0 %v649
    %v1114 = vpop.f32.mrf.mxu0
    %v1115 = vadd.f32 %v157, %v1114
    %v1116 = vpop.f32.mrf.mxu0
    %v1117 = vpop.f32.mrf.mxu0
    %v1118 = vadd.f32 %v157, %v1117
    %v1119 = vpop.f32.mrf.mxu0
    %1120 = vmatprep.mubr.bf16.mxu0 0
    %1121 = vmatmul.mubr.bf16.gmra.mxu0 %v652
    %v1122 = vpop.f32.mrf.mxu0
    %v1123 = vadd.f32 %v157, %v1122
    %v1124 = vpop.f32.mrf.mxu0
    %v1125 = vpop.f32.mrf.mxu0
    %v1126 = vadd.f32 %v157, %v1125
    %v1127 = vpop.f32.mrf.mxu0
    %1128 = vmatprep.mubr.bf16.mxu0 0
    %1129 = vmatmul.mubr.bf16.gmra.mxu0 %v655
    %v1130 = vpop.f32.mrf.mxu0
    %v1131 = vadd.f32 %v157, %v1130
    %v1132 = vpop.f32.mrf.mxu0
    %v1133 = vpop.f32.mrf.mxu0
    %v1134 = vadd.f32 %v157, %v1133
    %v1135 = vpop.f32.mrf.mxu0
    %1136 = vmatprep.mubr.bf16.mxu0 0
    %1137 = vmatmul.mubr.bf16.gmra.mxu0 %v658
    %v1138 = vpop.f32.mrf.mxu0
    %v1139 = vadd.f32 %v157, %v1138
    %v1140 = vpop.f32.mrf.mxu0
    %v1141 = vpop.f32.mrf.mxu0
    %v1142 = vadd.f32 %v157, %v1141
    %v1143 = vpop.f32.mrf.mxu0
    %1144 = vmatprep.mubr.bf16.mxu0 0
    %1145 = vmatmul.mubr.bf16.gmra.mxu0 %v661
    %v1146 = vpop.f32.mrf.mxu0
    %v1147 = vadd.f32 %v157, %v1146
    %v1148 = vpop.f32.mrf.mxu0
    %v1149 = vpop.f32.mrf.mxu0
    %v1150 = vadd.f32 %v157, %v1149
    %v1151 = vpop.f32.mrf.mxu0
    %1152 = vmatprep.mubr.bf16.mxu0 0
    %1153 = vmatmul.mubr.bf16.gmra.mxu0 %v664
    %v1154 = vpop.f32.mrf.mxu0
    %v1155 = vadd.f32 %v157, %v1154
    %v1156 = vpop.f32.mrf.mxu0
    %v1157 = vpop.f32.mrf.mxu0
    %v1158 = vadd.f32 %v157, %v1157
    %v1159 = vpop.f32.mrf.mxu0
    %1160 = vmatprep.mubr.bf16.mxu0 0
    %1161 = vmatmul.mubr.bf16.gmra.mxu0 %v667
    %v1162 = vpop.f32.mrf.mxu0
    %v1163 = vadd.f32 %v157, %v1162
    %v1164 = vpop.f32.mrf.mxu0
    %v1165 = vpop.f32.mrf.mxu0
    %v1166 = vadd.f32 %v157, %v1165
    %v1167 = vpop.f32.mrf.mxu0
    %1168 = vmatprep.mubr.bf16.mxu0 0
    %1169 = vmatmul.mubr.bf16.gmra.mxu0 %v670
    %v1170 = vpop.f32.mrf.mxu0
    %v1171 = vadd.f32 %v157, %v1170
    %v1172 = vpop.f32.mrf.mxu0
    %v1173 = vpop.f32.mrf.mxu0
    %v1174 = vadd.f32 %v157, %v1173
    %v1175 = vpop.f32.mrf.mxu0
    %1176 = vmatprep.mubr.bf16.mxu0 0
    %1177 = vmatmul.mubr.bf16.gmra.mxu0 %v673
    %v1178 = vpop.f32.mrf.mxu0
    %v1179 = vadd.f32 %v157, %v1178
    %v1180 = vpop.f32.mrf.mxu0
    %v1181 = vpop.f32.mrf.mxu0
    %v1182 = vadd.f32 %v157, %v1181
    %v1183 = vpop.f32.mrf.mxu0
    %1184 = vmatprep.mubr.bf16.mxu0 0
    %1185 = vmatmul.mubr.bf16.gmra.mxu0 %v676
    %v1186 = vpop.f32.mrf.mxu0
    %v1187 = vadd.f32 %v157, %v1186
    %v1188 = vpop.f32.mrf.mxu0
    %v1189 = vpop.f32.mrf.mxu0
    %v1190 = vadd.f32 %v157, %v1189
    %v1191 = vpop.f32.mrf.mxu0
    %1192 = vmatprep.mubr.bf16.mxu0 0
    %1193 = vmatmul.mubr.bf16.gmra.mxu0 %v679
    %v1194 = vpop.f32.mrf.mxu0
    %v1195 = vadd.f32 %v157, %v1194
    %v1196 = vpop.f32.mrf.mxu0
    %v1197 = vpop.f32.mrf.mxu0
    %v1198 = vadd.f32 %v157, %v1197
    %v1199 = vpop.f32.mrf.mxu0
    %1200 = vmatprep.mubr.bf16.mxu0 0
    %1201 = vmatmul.mubr.bf16.gmra.mxu0 %v682
    %v1202 = vpop.f32.mrf.mxu0
    %v1203 = vadd.f32 %v157, %v1202
    %v1204 = vpop.f32.mrf.mxu0
    %v1205 = vpop.f32.mrf.mxu0
    %v1206 = vadd.f32 %v157, %v1205
    %v1207 = vpop.f32.mrf.mxu0
    %1208 = vmatprep.mubr.bf16.mxu0 0
    %1209 = vmatmul.mubr.bf16.gmra.mxu0 %v685
    %v1210 = vpop.f32.mrf.mxu0
    %v1211 = vadd.f32 %v157, %v1210
    %v1212 = vpop.f32.mrf.mxu0
    %v1213 = vpop.f32.mrf.mxu0
    %v1214 = vadd.f32 %v157, %v1213
    %v1215 = vpop.f32.mrf.mxu0
    %1216 = vmatprep.mubr.bf16.mxu0 0
    %1217 = vmatmul.mubr.bf16.gmra.mxu0 %v688
    %v1218 = vpop.f32.mrf.mxu0
    %v1219 = vadd.f32 %v157, %v1218
    %v1220 = vpop.f32.mrf.mxu0
    %v1221 = vpop.f32.mrf.mxu0
    %v1222 = vadd.f32 %v157, %v1221
    %v1223 = vpop.f32.mrf.mxu0
    %1224 = vmatprep.mubr.bf16.mxu0 0
    %1225 = vmatmul.mubr.bf16.gmra.mxu0 %v691
    %v1226 = vpop.f32.mrf.mxu0
    %v1227 = vadd.f32 %v157, %v1226
    %v1228 = vpop.f32.mrf.mxu0
    %v1229 = vpop.f32.mrf.mxu0
    %v1230 = vadd.f32 %v157, %v1229
    %v1231 = vpop.f32.mrf.mxu0
    %1232 = vmatprep.mubr.bf16.mxu0 0
    %1233 = vmatmul.mubr.bf16.gmra.mxu0 %v694
    %v1234 = vpop.f32.mrf.mxu0
    %v1235 = vadd.f32 %v157, %v1234
    %v1236 = vpop.f32.mrf.mxu0
    %v1237 = vpop.f32.mrf.mxu0
    %v1238 = vadd.f32 %v157, %v1237
    %v1239 = vpop.f32.mrf.mxu0
    %1240 = vdwg.mxu0
    %vm1241 = vcmask 785408
    %1242 = vst.msk [vmem:[#allocation2] sm:$0xff] %vm1241, %v731
    %1243 = vst.msk [vmem:[#allocation2 + $0x8] sm:$0xff] %vm1241, %v734
    %1244 = vst.msk [vmem:[#allocation2 + $0x10] sm:$0xff] %vm1241, %v739
    %1245 = vst.msk [vmem:[#allocation2 + $0x18] sm:$0xff] %vm1241, %v742
    %1246 = vst.msk [vmem:[#allocation2 + $0x20] sm:$0xff] %vm1241, %v747
    %1247 = vst.msk [vmem:[#allocation2 + $0x28] sm:$0xff] %vm1241, %v750
    %1248 = vst.msk [vmem:[#allocation2 + $0x30] sm:$0xff] %vm1241, %v755
    %1249 = vst.msk [vmem:[#allocation2 + $0x38] sm:$0xff] %vm1241, %v758
    %1250 = vst.msk [vmem:[#allocation2 + $0x40] sm:$0xff] %vm1241, %v763
    %1251 = vst.msk [vmem:[#allocation2 + $0x48] sm:$0xff] %vm1241, %v766
    %1252 = vst.msk [vmem:[#allocation2 + $0x50] sm:$0xff] %vm1241, %v771
    %1253 = vst.msk [vmem:[#allocation2 + $0x58] sm:$0xff] %vm1241, %v774
    %1254 = vst.msk [vmem:[#allocation2 + $0x60] sm:$0xff] %vm1241, %v779
    %1255 = vst.msk [vmem:[#allocation2 + $0x68] sm:$0xff] %vm1241, %v782
    %1256 = vst.msk [vmem:[#allocation2 + $0x70] sm:$0xff] %vm1241, %v787
    %1257 = vst.msk [vmem:[#allocation2 + $0x78] sm:$0xff] %vm1241, %v790
    %1258 = vst.msk [vmem:[#allocation2 + $0x80] sm:$0xff] %vm1241, %v795
    %1259 = vst.msk [vmem:[#allocation2 + $0x88] sm:$0xff] %vm1241, %v798
    %1260 = vst.msk [vmem:[#allocation2 + $0x90] sm:$0xff] %vm1241, %v803
    %1261 = vst.msk [vmem:[#allocation2 + $0x98] sm:$0xff] %vm1241, %v806
    %1262 = vst.msk [vmem:[#allocation2 + $0xa0] sm:$0xff] %vm1241, %v811
    %1263 = vst.msk [vmem:[#allocation2 + $0xa8] sm:$0xff] %vm1241, %v814
    %1264 = vst.msk [vmem:[#allocation2 + $0xb0] sm:$0xff] %vm1241, %v819
    %1265 = vst.msk [vmem:[#allocation2 + $0xb8] sm:$0xff] %vm1241, %v822
    %1266 = vst.msk [vmem:[#allocation2 + $0xc0] sm:$0xff] %vm1241, %v827
    %1267 = vst.msk [vmem:[#allocation2 + $0xc8] sm:$0xff] %vm1241, %v830
    %1268 = vst.msk [vmem:[#allocation2 + $0xd0] sm:$0xff] %vm1241, %v835
    %1269 = vst.msk [vmem:[#allocation2 + $0xd8] sm:$0xff] %vm1241, %v838
    %1270 = vst.msk [vmem:[#allocation2 + $0xe0] sm:$0xff] %vm1241, %v843
    %1271 = vst.msk [vmem:[#allocation2 + $0xe8] sm:$0xff] %vm1241, %v846
    %1272 = vst.msk [vmem:[#allocation2 + $0xf0] sm:$0xff] %vm1241, %v851
    %1273 = vst.msk [vmem:[#allocation2 + $0xf8] sm:$0xff] %vm1241, %v854
    %1274 = vst.msk [vmem:[#allocation2 + $0x100] sm:$0xff] %vm1241, %v859
    %1275 = vst.msk [vmem:[#allocation2 + $0x108] sm:$0xff] %vm1241, %v862
    %1276 = vst.msk [vmem:[#allocation2 + $0x110] sm:$0xff] %vm1241, %v867
    %1277 = vst.msk [vmem:[#allocation2 + $0x118] sm:$0xff] %vm1241, %v870
    %1278 = vst.msk [vmem:[#allocation2 + $0x120] sm:$0xff] %vm1241, %v875
    %1279 = vst.msk [vmem:[#allocation2 + $0x128] sm:$0xff] %vm1241, %v878
    %1280 = vst.msk [vmem:[#allocation2 + $0x130] sm:$0xff] %vm1241, %v883
    %1281 = vst.msk [vmem:[#allocation2 + $0x138] sm:$0xff] %vm1241, %v886
    %1282 = vst.msk [vmem:[#allocation2 + $0x140] sm:$0xff] %vm1241, %v891
    %1283 = vst.msk [vmem:[#allocation2 + $0x148] sm:$0xff] %vm1241, %v894
    %1284 = vst.msk [vmem:[#allocation2 + $0x150] sm:$0xff] %vm1241, %v899
    %1285 = vst.msk [vmem:[#allocation2 + $0x158] sm:$0xff] %vm1241, %v902
    %1286 = vst.msk [vmem:[#allocation2 + $0x160] sm:$0xff] %vm1241, %v907
    %1287 = vst.msk [vmem:[#allocation2 + $0x168] sm:$0xff] %vm1241, %v910
    %1288 = vst.msk [vmem:[#allocation2 + $0x170] sm:$0xff] %vm1241, %v915
    %1289 = vst.msk [vmem:[#allocation2 + $0x178] sm:$0xff] %vm1241, %v918
    %1290 = vst.msk [vmem:[#allocation2 + $0x180] sm:$0xff] %vm1241, %v923
    %1291 = vst.msk [vmem:[#allocation2 + $0x188] sm:$0xff] %vm1241, %v926
    %1292 = vst.msk [vmem:[#allocation2 + $0x190] sm:$0xff] %vm1241, %v931
    %1293 = vst.msk [vmem:[#allocation2 + $0x198] sm:$0xff] %vm1241, %v934
    %1294 = vst.msk [vmem:[#allocation2 + $0x1a0] sm:$0xff] %vm1241, %v939
    %1295 = vst.msk [vmem:[#allocation2 + $0x1a8] sm:$0xff] %vm1241, %v942
    %1296 = vst.msk [vmem:[#allocation2 + $0x1b0] sm:$0xff] %vm1241, %v947
    %1297 = vst.msk [vmem:[#allocation2 + $0x1b8] sm:$0xff] %vm1241, %v950
    %1298 = vst.msk [vmem:[#allocation2 + $0x1c0] sm:$0xff] %vm1241, %v955
    %1299 = vst.msk [vmem:[#allocation2 + $0x1c8] sm:$0xff] %vm1241, %v958
    %1300 = vst.msk [vmem:[#allocation2 + $0x1d0] sm:$0xff] %vm1241, %v963
    %1301 = vst.msk [vmem:[#allocation2 + $0x1d8] sm:$0xff] %vm1241, %v966
    %1302 = vst.msk [vmem:[#allocation2 + $0x1e0] sm:$0xff] %vm1241, %v971
    %1303 = vst.msk [vmem:[#allocation2 + $0x1e8] sm:$0xff] %vm1241, %v974
    %1304 = vst.msk [vmem:[#allocation2 + $0x1f0] sm:$0xff] %vm1241, %v979
    %1305 = vst.msk [vmem:[#allocation2 + $0x1f8] sm:$0xff] %vm1241, %v982
    %1306 = vst.msk [vmem:[#allocation2 + $0x200] sm:$0xff] %vm1241, %v987
    %1307 = vst.msk [vmem:[#allocation2 + $0x208] sm:$0xff] %vm1241, %v990
    %1308 = vst.msk [vmem:[#allocation2 + $0x210] sm:$0xff] %vm1241, %v995
    %1309 = vst.msk [vmem:[#allocation2 + $0x218] sm:$0xff] %vm1241, %v998
    %1310 = vst.msk [vmem:[#allocation2 + $0x220] sm:$0xff] %vm1241, %v1003
    %1311 = vst.msk [vmem:[#allocation2 + $0x228] sm:$0xff] %vm1241, %v1006
    %1312 = vst.msk [vmem:[#allocation2 + $0x230] sm:$0xff] %vm1241, %v1011
    %1313 = vst.msk [vmem:[#allocation2 + $0x238] sm:$0xff] %vm1241, %v1014
    %1314 = vst.msk [vmem:[#allocation2 + $0x240] sm:$0xff] %vm1241, %v1019
    %1315 = vst.msk [vmem:[#allocation2 + $0x248] sm:$0xff] %vm1241, %v1022
    %1316 = vst.msk [vmem:[#allocation2 + $0x250] sm:$0xff] %vm1241, %v1027
    %1317 = vst.msk [vmem:[#allocation2 + $0x258] sm:$0xff] %vm1241, %v1030
    %1318 = vst.msk [vmem:[#allocation2 + $0x260] sm:$0xff] %vm1241, %v1035
    %1319 = vst.msk [vmem:[#allocation2 + $0x268] sm:$0xff] %vm1241, %v1038
    %1320 = vst.msk [vmem:[#allocation2 + $0x270] sm:$0xff] %vm1241, %v1043
    %1321 = vst.msk [vmem:[#allocation2 + $0x278] sm:$0xff] %vm1241, %v1046
    %1322 = vst.msk [vmem:[#allocation2 + $0x280] sm:$0xff] %vm1241, %v1051
    %1323 = vst.msk [vmem:[#allocation2 + $0x288] sm:$0xff] %vm1241, %v1054
    %1324 = vst.msk [vmem:[#allocation2 + $0x290] sm:$0xff] %vm1241, %v1059
    %1325 = vst.msk [vmem:[#allocation2 + $0x298] sm:$0xff] %vm1241, %v1062
    %1326 = vst.msk [vmem:[#allocation2 + $0x2a0] sm:$0xff] %vm1241, %v1067
    %1327 = vst.msk [vmem:[#allocation2 + $0x2a8] sm:$0xff] %vm1241, %v1070
    %1328 = vst.msk [vmem:[#allocation2 + $0x2b0] sm:$0xff] %vm1241, %v1075
    %1329 = vst.msk [vmem:[#allocation2 + $0x2b8] sm:$0xff] %vm1241, %v1078
    %1330 = vst.msk [vmem:[#allocation2 + $0x2c0] sm:$0xff] %vm1241, %v1083
    %1331 = vst.msk [vmem:[#allocation2 + $0x2c8] sm:$0xff] %vm1241, %v1086
    %1332 = vst.msk [vmem:[#allocation2 + $0x2d0] sm:$0xff] %vm1241, %v1091
    %1333 = vst.msk [vmem:[#allocation2 + $0x2d8] sm:$0xff] %vm1241, %v1094
    %1334 = vst.msk [vmem:[#allocation2 + $0x2e0] sm:$0xff] %vm1241, %v1099
    %1335 = vst.msk [vmem:[#allocation2 + $0x2e8] sm:$0xff] %vm1241, %v1102
    %1336 = vst.msk [vmem:[#allocation2 + $0x2f0] sm:$0xff] %vm1241, %v1107
    %1337 = vst.msk [vmem:[#allocation2 + $0x2f8] sm:$0xff] %vm1241, %v1110
    %1338 = vst.msk [vmem:[#allocation2 + $0x300] sm:$0xff] %vm1241, %v1115
    %1339 = vst.msk [vmem:[#allocation2 + $0x308] sm:$0xff] %vm1241, %v1118
    %1340 = vst.msk [vmem:[#allocation2 + $0x310] sm:$0xff] %vm1241, %v1123
    %1341 = vst.msk [vmem:[#allocation2 + $0x318] sm:$0xff] %vm1241, %v1126
    %1342 = vst.msk [vmem:[#allocation2 + $0x320] sm:$0xff] %vm1241, %v1131
    %1343 = vst.msk [vmem:[#allocation2 + $0x328] sm:$0xff] %vm1241, %v1134
    %1344 = vst.msk [vmem:[#allocation2 + $0x330] sm:$0xff] %vm1241, %v1139
    %1345 = vst.msk [vmem:[#allocation2 + $0x338] sm:$0xff] %vm1241, %v1142
    %1346 = vst.msk [vmem:[#allocation2 + $0x340] sm:$0xff] %vm1241, %v1147
    %1347 = vst.msk [vmem:[#allocation2 + $0x348] sm:$0xff] %vm1241, %v1150
    %1348 = vst.msk [vmem:[#allocation2 + $0x350] sm:$0xff] %vm1241, %v1155
    %1349 = vst.msk [vmem:[#allocation2 + $0x358] sm:$0xff] %vm1241, %v1158
    %1350 = vst.msk [vmem:[#allocation2 + $0x360] sm:$0xff] %vm1241, %v1163
    %1351 = vst.msk [vmem:[#allocation2 + $0x368] sm:$0xff] %vm1241, %v1166
    %1352 = vst.msk [vmem:[#allocation2 + $0x370] sm:$0xff] %vm1241, %v1171
    %1353 = vst.msk [vmem:[#allocation2 + $0x378] sm:$0xff] %vm1241, %v1174
    %1354 = vst.msk [vmem:[#allocation2 + $0x380] sm:$0xff] %vm1241, %v1179
    %1355 = vst.msk [vmem:[#allocation2 + $0x388] sm:$0xff] %vm1241, %v1182
    %1356 = vst.msk [vmem:[#allocation2 + $0x390] sm:$0xff] %vm1241, %v1187
    %1357 = vst.msk [vmem:[#allocation2 + $0x398] sm:$0xff] %vm1241, %v1190
    %1358 = vst.msk [vmem:[#allocation2 + $0x3a0] sm:$0xff] %vm1241, %v1195
    %1359 = vst.msk [vmem:[#allocation2 + $0x3a8] sm:$0xff] %vm1241, %v1198
    %1360 = vst.msk [vmem:[#allocation2 + $0x3b0] sm:$0xff] %vm1241, %v1203
    %1361 = vst.msk [vmem:[#allocation2 + $0x3b8] sm:$0xff] %vm1241, %v1206
    %1362 = vst.msk [vmem:[#allocation2 + $0x3c0] sm:$0xff] %vm1241, %v1211
    %1363 = vst.msk [vmem:[#allocation2 + $0x3c8] sm:$0xff] %vm1241, %v1214
    %1364 = vst.msk [vmem:[#allocation2 + $0x3d0] sm:$0xff] %vm1241, %v1219
    %1365 = vst.msk [vmem:[#allocation2 + $0x3d8] sm:$0xff] %vm1241, %v1222
    %1366 = vst.msk [vmem:[#allocation2 + $0x3e0] sm:$0xff] %vm1241, %v1227
    %1367 = vst.msk [vmem:[#allocation2 + $0x3e8] sm:$0xff] %vm1241, %v1230
    %1368 = vst.msk [vmem:[#allocation2 + $0x3f0] sm:$0xff] %vm1241, %v1235
    %1369 = vst.msk [vmem:[#allocation2 + $0x3f8] sm:$0xff] %vm1241, %v1238
    // Predicated region
    $region14: #{_lambda_.1} parent=1 // pred_check
      _
    $region15: #{_lambda_.1} parent=1 // pred_check_branch
      %1371 = sbr.rel (0) target = $region17
    $region16: #{_lambda_.1} parent=1 // pred_region
      %s1373 = ssub.s32 16384, 16384
      %1374 = vsyncadd [#allocation3], %s1373
      %s1375 = sshll.u32 [#allocation2], 4
      %s1376 = int_to_ptr.vmem [resolvable:$true] %s1375
      %1381 = dma.vmem_to_hbm [thread:$0]  %s1376, 16384, %s3, [#allocation3], 128, 128, 8
    $region17: #{_lambda_.1} parent=1 // pred_fallthru
      _
    // Predicated region
    $region18: #{_lambda_.1} parent=1 // pred_check
      _
    $region19: #{_lambda_.1} parent=1 // pred_check_branch
      %1383 = sbr.rel (0) target = $region21
    $region20: #{_lambda_.1} parent=1 // pred_region
      %1384 = dma.done [#allocation3], 16384
    $region21: #{_lambda_.1} parent=1 // pred_fallthru
      _
    %1385 = vsyncpa [#allocation3], 1

</llo_original>
